<compile_context>
chip_gen: v6e
topology: v6e:2x2x1
jax: 0.10.0
libtpu: 0.0.40
codegen_flags: <defaults>
</compile_context>

<pallas_src>
import functools

import jax
import jax.numpy as jnp
from jax.experimental import pallas as pl
from jax.experimental.pallas import tpu as pltpu


def _round_up(x, m):
    return ((x + m - 1) // m) * m


def _pick_row_block(H, target):
    """Largest divisor of H that is <= target (so TH | H)."""
    th = max(1, min(target, H))
    while H % th != 0:
        th -= 1
    return th


def _conv3x3_kernel(x_ref, h0_ref, h1_ref, w_ref, b_ref, o_ref, *, TH, Wp, Cin):
    """One (batch, row-block) tile per grid step.

    x_ref : (1, TH*Wp, Cin)       TH padded rows, flattened row-major over (TH, Wp)
    h0_ref: (1, Wp, Cin)          halo row  r*TH + TH      of the padded image
    h1_ref: (1, Wp, Cin)          halo row  r*TH + TH + 1
    w_ref : (9*Cin, Cout_pad)     packed weights, row = (ky*3 + kx)*Cin + ci
    b_ref : (1, Cout_pad)         packed bias (zero in padded channels)
    o_ref : (1, TH*Wp, Cout_pad)  output rows, same flattening (junk in the
                                  Wp-W right margin; wrapper slices it off)
    """
    rows_out = TH * Wp
    rows_in = (TH + 2) * Wp

    # (TH+2) padded rows for this block. Every piece is a multiple of 8 rows,
    # so this sublane concat is layout-preserving (no retiling copies).
    xw = jnp.concatenate([x_ref[0], h0_ref[0], h1_ref[0]], axis=0)

    # Tap (ky, kx) for output position (h, w) lives at flat row
    # (h + ky) * Wp + (w + kx).  kx is handled with an XLU roll (avoids
    # unaligned sublane slices), ky with an 8-aligned static slice.  Roll
    # wrap-around and the w >= W columns only pollute junk output columns,
    # which the wrapper discards.
    taps = {}
    for kx in range(3):
        xs = xw if kx == 0 else pltpu.roll(xw, shift=rows_in - kx, axis=0)
        for ky in range(3):
            taps[(ky, kx)] = xs[ky * Wp: ky * Wp + rows_out, :]

    # im2col: concat the 9 taps on the lane axis -> single K = 9*Cin matmul.
    lhs = jnp.concatenate(
        [taps[(ky, kx)] for ky in range(3) for kx in range(3)], axis=1)

    acc = jnp.dot(lhs, w_ref[...], preferred_element_type=jnp.float32)
    acc = acc + b_ref[...].astype(jnp.float32)          # (1, Cpad) broadcast
    o_ref[0, :, :] = acc.astype(o_ref.dtype)


def conv3x3(x_nchw, weight_oihw, bias, *, use_refl=True, row_block=8):
    """Equivalent of Conv3x3.forward: reflection/zero pad(1) + Conv2d(3x3)."""
    N, Cin, H, W = x_nchw.shape
    Cout = weight_oihw.shape[0]

    # ---- glue (plain JAX): padding + layout. ----
    # TODO(synk): fold the reflection pad and the NCHW<->NHWC transposes into
    # the kernel (halo with edge duplication) to remove these extra HBM passes.
    pad_mode = "reflect" if use_refl else "constant"
    xp = jnp.pad(x_nchw, ((0, 0), (0, 0), (1, 1), (1, 1)), mode=pad_mode)
    xp = jnp.transpose(xp, (0, 2, 3, 1))                     # (N, H+2, W+2, Cin)

    Wp = _round_up(W + 2, 8)                                 # sublane-aligned width
    if Wp > W + 2:
        xp = jnp.pad(xp, ((0, 0), (0, 0), (0, Wp - (W + 2)), (0, 0)))
    x_flat = xp.reshape(N, (H + 2) * Wp, Cin)                # flattened spatial

    # Packed, lane-dense weights / bias.
    Cpad = _round_up(Cout, 128)
    w_packed = jnp.transpose(weight_oihw, (2, 3, 1, 0)).reshape(9 * Cin, Cout)
    w_packed = jnp.pad(w_packed, ((0, 0), (0, Cpad - Cout)))
    b_packed = jnp.pad(bias, ((0, Cpad - Cout),)).reshape(1, Cpad)

    TH = _pick_row_block(H, row_block)
    num_r = H // TH

    out_flat = pl.pallas_call(
        functools.partial(_conv3x3_kernel, TH=TH, Wp=Wp, Cin=Cin),
        out_shape=jax.ShapeDtypeStruct((N, H * Wp, Cpad), x_nchw.dtype),
        grid_spec=pltpu.PrefetchScalarGridSpec(
            num_scalar_prefetch=0,
            grid=(N, num_r),
            in_specs=[
                # TH padded rows of this row block (flattened).
                pl.BlockSpec((1, TH * Wp, Cin), lambda n, r: (n, r, 0)),
                # 2-row halo, fetched as two one-row blocks (block size Wp rows).
                pl.BlockSpec((1, Wp, Cin), lambda n, r: (n, (r + 1) * TH, 0)),
                pl.BlockSpec((1, Wp, Cin), lambda n, r: (n, (r + 1) * TH + 1, 0)),
                # Packed weights / bias: constant index -> resident in VMEM.
                pl.BlockSpec((9 * Cin, Cpad), lambda n, r: (0, 0)),
                pl.BlockSpec((1, Cpad), lambda n, r: (0, 0)),
            ],
            out_specs=pl.BlockSpec((1, TH * Wp, Cpad), lambda n, r: (n, r, 0)),
        ),
        compiler_params=pltpu.CompilerParams(
            dimension_semantics=("parallel", "parallel"),
            vmem_limit_bytes=32 * 1024 * 1024,
        ),
    )(x_flat, x_flat, x_flat, w_packed, b_packed)

    out = out_flat.reshape(N, H, Wp, Cpad)[:, :, :W, :Cout]  # drop width/channel pad
    return jnp.transpose(out, (0, 3, 1, 2))                  # back to NCHW


def _reference_conv3x3(x_nchw, weight_oihw, bias, *, use_refl=True):
    pad_mode = "reflect" if use_refl else "constant"
    xp = jnp.pad(x_nchw, ((0, 0), (0, 0), (1, 1), (1, 1)), mode=pad_mode)
    out = jax.lax.conv_general_dilated(
        xp, weight_oihw, window_strides=(1, 1), padding="VALID",
        dimension_numbers=("NCHW", "OIHW", "NCHW"))
    return out + bias[None, :, None, None]


if __name__ == "__main__":
    # Small shapes consistent with the module: NCHW input, 3x3 conv.
    N, Cin, Cout, H, W = 2, 4, 8, 16, 16

    key = jax.random.PRNGKey(0)
    k_x, k_w, k_b = jax.random.split(key, 3)

    x = jax.random.normal(k_x, (N, Cin, H, W), dtype=jnp.float32)

    # Deterministic parameter init (PyTorch-style uniform bound = 1/sqrt(fan_in)).
    fan_in = Cin * 3 * 3
    bound = 1.0 / (fan_in ** 0.5)
    weight = jax.random.uniform(k_w, (Cout, Cin, 3, 3),
                                minval=-bound, maxval=bound, dtype=jnp.float32)
    bias = jax.random.uniform(k_b, (Cout,),
                              minval=-bound, maxval=bound, dtype=jnp.float32)

    conv = jax.jit(lambda a, w, b: conv3x3(a, w, b, use_refl=True))
    out = jax.block_until_ready(conv(x, weight, bias))

    ref = jax.block_until_ready(_reference_conv3x3(x, weight, bias, use_refl=True))
    assert out.shape == (N, Cout, H, W), out.shape
    max_err = float(jnp.max(jnp.abs(out - ref)))
    assert jnp.allclose(out, ref, atol=1e-3, rtol=1e-3), max_err

    print("KERNEL_OK")
</pallas_src>

<mosaic_0001>
module attributes {stable_mosaic.version = 11 : i64} {
  func.func @_conv3x3_kernel(%arg0: i32, %arg1: i32, %arg2: memref<1x192x4xf32, #tpu.memory_space<vmem>>, %arg3: memref<1x24x4xf32, #tpu.memory_space<vmem>>, %arg4: memref<1x24x4xf32, #tpu.memory_space<vmem>>, %arg5: memref<36x128xf32, #tpu.memory_space<vmem>>, %arg6: memref<1x128xf32, #tpu.memory_space<vmem>>, %arg7: memref<1x192x128xf32, #tpu.memory_space<vmem>>) attributes {dimension_semantics = [#tpu.dimension_semantics<parallel>, #tpu.dimension_semantics<parallel>], iteration_bounds = array<i64: 2, 2>, scalar_prefetch = 0 : i64, scratch_operands = 0 : i64, tpu.core_type = #tpu.core_type<tc>, window_params = [{transform_indices = @transform_0, window_bounds = array<i64: 1, 192, 4>}, {transform_indices = @transform_1, window_bounds = array<i64: 1, 24, 4>}, {transform_indices = @transform_2, window_bounds = array<i64: 1, 24, 4>}, {pipeline_mode = #tpu.pipeline_mode<synchronous>, transform_indices = @transform_3, window_bounds = array<i64: 36, 128>}, {pipeline_mode = #tpu.pipeline_mode<synchronous>, transform_indices = @transform_4, window_bounds = array<i64: 1, 128>}, {transform_indices = @transform_5, window_bounds = array<i64: 1, 192, 128>}]} {
    %c0 = arith.constant 0 : index
    %c0_0 = arith.constant 0 : index
    %c0_1 = arith.constant 0 : index
    %0 = vector.load %arg2[%c0, %c0_0, %c0_1] : memref<1x192x4xf32, #tpu.memory_space<vmem>>, vector<1x192x4xf32>
    %1 = vector.shape_cast %0 : vector<1x192x4xf32> to vector<192x4xf32>
    %c0_2 = arith.constant 0 : index
    %c0_3 = arith.constant 0 : index
    %c0_4 = arith.constant 0 : index
    %2 = vector.load %arg3[%c0_2, %c0_3, %c0_4] : memref<1x24x4xf32, #tpu.memory_space<vmem>>, vector<1x24x4xf32>
    %3 = vector.shape_cast %2 : vector<1x24x4xf32> to vector<24x4xf32>
    %c0_5 = arith.constant 0 : index
    %c0_6 = arith.constant 0 : index
    %c0_7 = arith.constant 0 : index
    %4 = vector.load %arg4[%c0_5, %c0_6, %c0_7] : memref<1x24x4xf32, #tpu.memory_space<vmem>>, vector<1x24x4xf32>
    %5 = vector.shape_cast %4 : vector<1x24x4xf32> to vector<24x4xf32>
    %6 = tpu.concatenate %1, %3, %5 in 0 : vector<192x4xf32>, vector<24x4xf32>, vector<24x4xf32> -> vector<240x4xf32>
    %7 = vector.extract_strided_slice %6 {offsets = [0, 0], sizes = [192, 4], strides = [1, 1]} : vector<240x4xf32> to vector<192x4xf32>
    %8 = vector.extract_strided_slice %6 {offsets = [24, 0], sizes = [192, 4], strides = [1, 1]} : vector<240x4xf32> to vector<192x4xf32>
    %9 = vector.extract_strided_slice %6 {offsets = [48, 0], sizes = [192, 4], strides = [1, 1]} : vector<240x4xf32> to vector<192x4xf32>
    %c239_i32 = arith.constant 239 : i32
    %10 = tpu.dynamic_rotate %6 by %c239_i32 dim 0 : vector<240x4xf32>, i32 -> vector<240x4xf32>
    %11 = vector.extract_strided_slice %10 {offsets = [0, 0], sizes = [192, 4], strides = [1, 1]} : vector<240x4xf32> to vector<192x4xf32>
    %12 = vector.extract_strided_slice %10 {offsets = [24, 0], sizes = [192, 4], strides = [1, 1]} : vector<240x4xf32> to vector<192x4xf32>
    %13 = vector.extract_strided_slice %10 {offsets = [48, 0], sizes = [192, 4], strides = [1, 1]} : vector<240x4xf32> to vector<192x4xf32>
    %c238_i32 = arith.constant 238 : i32
    %14 = tpu.dynamic_rotate %6 by %c238_i32 dim 0 : vector<240x4xf32>, i32 -> vector<240x4xf32>
    %15 = vector.extract_strided_slice %14 {offsets = [0, 0], sizes = [192, 4], strides = [1, 1]} : vector<240x4xf32> to vector<192x4xf32>
    %16 = vector.extract_strided_slice %14 {offsets = [24, 0], sizes = [192, 4], strides = [1, 1]} : vector<240x4xf32> to vector<192x4xf32>
    %17 = vector.extract_strided_slice %14 {offsets = [48, 0], sizes = [192, 4], strides = [1, 1]} : vector<240x4xf32> to vector<192x4xf32>
    %18 = tpu.concatenate %7, %11, %15, %8, %12, %16, %9, %13, %17 in 1 : vector<192x4xf32>, vector<192x4xf32>, vector<192x4xf32>, vector<192x4xf32>, vector<192x4xf32>, vector<192x4xf32>, vector<192x4xf32>, vector<192x4xf32>, vector<192x4xf32> -> vector<192x36xf32>
    %c0_8 = arith.constant 0 : index
    %c0_9 = arith.constant 0 : index
    %19 = vector.load %arg5[%c0_8, %c0_9] : memref<36x128xf32, #tpu.memory_space<vmem>>, vector<36x128xf32>
    %cst = arith.constant dense<0.000000e+00> : vector<192x128xf32>
    %20 = tpu.matmul %18, %19, %cst {dimension_numbers = #tpu.dot_dimension_numbers<[1], [0], [0], [1], [0, 0, 1, 1], [], []>} : vector<192x36xf32>, vector<36x128xf32>, vector<192x128xf32> -> vector<192x128xf32>
    %c0_10 = arith.constant 0 : index
    %c0_11 = arith.constant 0 : index
    %21 = vector.load %arg6[%c0_10, %c0_11] : memref<1x128xf32, #tpu.memory_space<vmem>>, vector<1x128xf32>
    %22 = vector.broadcast %21 : vector<1x128xf32> to vector<192x128xf32>
    %23 = arith.addf %20, %22 : vector<192x128xf32>
    %c0_12 = arith.constant 0 : index
    %c0_13 = arith.constant 0 : index
    %c0_14 = arith.constant 0 : index
    %24 = vector.load %arg7[%c0_12, %c0_13, %c0_14] : memref<1x192x128xf32, #tpu.memory_space<vmem>>, vector<1x192x128xf32>
    %25 = vector.shape_cast %24 : vector<1x192x128xf32> to vector<192x128xf32>
    %26 = vector.shape_cast %23 : vector<192x128xf32> to vector<1x192x128xf32>
    tpu.vector_store %arg7[%c0_12, %c0_13, %c0_14], %26 {strides = array<i32>} : memref<1x192x128xf32, #tpu.memory_space<vmem>>, vector<1x192x128xf32>,
    return
  }
  func.func @transform_0(%arg0: i32, %arg1: i32) -> (i32, i32, i32) {
    %c0_i32 = arith.constant 0 : i32
    %c0_i32_0 = arith.constant 0 : i32
    return %arg0, %arg1, %c0_i32 : i32, i32, i32
  }
  func.func @transform_1(%arg0: i32, %arg1: i32) -> (i32, i32, i32) {
    %c1_i32 = arith.constant 1 : i32
    %0 = arith.addi %arg1, %c1_i32 : i32
    %c8_i32 = arith.constant 8 : i32
    %1 = arith.muli %0, %c8_i32 : i32
    %c0_i32 = arith.constant 0 : i32
    %c0_i32_0 = arith.constant 0 : i32
    return %arg0, %1, %c0_i32 : i32, i32, i32
  }
  func.func @transform_2(%arg0: i32, %arg1: i32) -> (i32, i32, i32) {
    %c1_i32 = arith.constant 1 : i32
    %0 = arith.addi %arg1, %c1_i32 : i32
    %c8_i32 = arith.constant 8 : i32
    %1 = arith.muli %0, %c8_i32 : i32
    %c1_i32_0 = arith.constant 1 : i32
    %2 = arith.addi %1, %c1_i32_0 : i32
    %c0_i32 = arith.constant 0 : i32
    %c0_i32_1 = arith.constant 0 : i32
    return %arg0, %2, %c0_i32 : i32, i32, i32
  }
  func.func @transform_3(%arg0: i32, %arg1: i32) -> (i32, i32) {
    %c0_i32 = arith.constant 0 : i32
    %c0_i32_0 = arith.constant 0 : i32
    %c0_i32_1 = arith.constant 0 : i32
    return %c0_i32, %c0_i32_0 : i32, i32
  }
  func.func @transform_4(%arg0: i32, %arg1: i32) -> (i32, i32) {
    %c0_i32 = arith.constant 0 : i32
    %c0_i32_0 = arith.constant 0 : i32
    %c0_i32_1 = arith.constant 0 : i32
    return %c0_i32, %c0_i32_0 : i32, i32
  }
  func.func @transform_5(%arg0: i32, %arg1: i32) -> (i32, i32, i32) {
    %c0_i32 = arith.constant 0 : i32
    %c0_i32_0 = arith.constant 0 : i32
    return %arg0, %arg1, %c0_i32 : i32, i32, i32
  }
}

</mosaic_0001>

<llo_original>
// kernel: _lambda_.1
$region0: #{_lambda_.1}
  #allocation0 [shape = 'u32[]', space=smem, size = 0x4, offset = 0x4, fixed_abs, tag = 'smem constant byte address 0x4 - core index']
  #allocation1 [shape = 'u32[144,128]{1,0:T(1,128)}', space=vmem, size = 0x12000, scoped, tag = 'internal scratch']
  %s0 = inlined_call_operand.vmem [shape: f32[2,432,4], index: 0, kind: input, shape index: {}, may-alias: {0,1,2}]
  %s1 = inlined_call_operand.vmem [shape: f32[2,432,4], index: 1, kind: input, shape index: {}, may-alias: {0,1,2}]
  %s2 = inlined_call_operand.vmem [shape: f32[2,432,4], index: 2, kind: input, shape index: {}, may-alias: {0,1,2}]
  %s3 = inlined_call_operand.vmem [shape: f32[36,128], index: 3, kind: input, shape index: {}]
  %s4 = inlined_call_operand.vmem [shape: f32[1,128], index: 4, kind: input, shape index: {}]
  %s5 = inlined_call_operand.vmem [shape: f32[2,384,128], index: 5, kind: output, shape index: {}]
  %s6 = sld [smem:[#allocation0]]
  $region53: #{_lambda_.1} parent=0
    _
  %s8 = ssub.s32 1, %s6
  %s9 = scalar_select 0, %s8, %s6
  loop: start=0, step=1, limit=6
  $region2: #{_lambda_.1} parent=0 // loop_pre_header
    _
  $region3: #{_lambda_.1} parent=0 // loop_header
    %s11 = sphi 0, %s15
    %p12 = scmp.ge.s32.totalorder %s11, 6
    %s18 = sphi 0, %s30
    %s19 = sphi 0, %s26
    %s20 = sphi 0, %s18
    %s21 = sphi 0, %s19
    %s22 = sphi 0, %s20
    %s23 = sphi 0, %s21
    %s35 = sphi 0, %s37
    %s38 = sphi 0, %s35
    %s39 = sphi 0, %s38
    %s55 = sphi 0, %s39
    %s67 = sphi 0, %s69
    %s70 = sphi 0, %s67
    %s71 = sphi 0, %s70
    %s87 = sphi 0, %s71
    %s101 = sphi 0, %s103
    %s104 = sphi 0, %s101
    %s105 = sphi 0, %s104
    %s121 = sphi 0, %s105
    %s125 = sphi 0, %s125
    %s127 = sphi 0, %s125
    %s128 = sphi 0, %s127
    %s142 = sphi 0, %s128
    %s146 = sphi 0, %s146
    %s148 = sphi 0, %s146
    %s149 = sphi 0, %s148
    %s163 = sphi 0, %s149
    %s171 = sphi 0, %s173
    %s174 = sphi 0, %s171
    %s175 = sphi 0, %s174
    %s191 = sphi 0, %s175
  $region4: #{_lambda_.1} parent=0 // loop_header_branch
    %14 = sbr.rel (%p12) target = $region8
  $region5: #{_lambda_.1} parent=0 // loop_body
    %s16 = ssub.s32 %s11, 1
    %s17 = ssub.s32 %s11, 2
    %s24 = sadd.s32 1, %s19
    %p25 = scmp.ge.s32.totalorder %s24, 2
    %s26 = scalar_select %p25, 0, %s24
    %s27 = sadd.s32 1, %s18
    %s28 = scalar_select %p25, %s27, %s18
    %p29 = scmp.ge.s32.totalorder %s28, 2
    %s30 = scalar_select %p29, 0, %s28
    %s31 = ssub.s32 %s18, %s30
    %s32 = ssub.s32 %s19, %s26
    %s33 = sor.u32 %s31, %s32
    %p34 = scmp.eq.s32.totalorder %s33, 0
    %s36 = sadd.s32 %s35, 1
    %s37 = scalar_select %p34, %s35, %s36
    %p40 = pneg %p34
    %p41 = scmp.eq.s32.totalorder %s11, 3
    %p42 = por %p40, %p41
    %p43 = scmp.ne.s32.totalorder %s35, %s38
    %p44 = scmp.eq.s32.totalorder %s11, 0
    %p45 = por %p43, %p44
    %p46 = scmp.ne.s32.totalorder %s35, %s38
    %p47 = scmp.eq.s32.totalorder %s16, 3
    %p48 = por %p46, %p47
    %p49 = scmp.ne.s32.totalorder %s38, %s39
    %p50 = scmp.eq.s32.totalorder %s16, 0
    %p51 = por %p49, %p50
    %p52 = scmp.ne.s32.totalorder %s38, %s39
    %p53 = scmp.eq.s32.totalorder %s17, 3
    %p54 = por %p52, %p53
    %p56 = scmp.ne.s32.totalorder %s39, %s55
    %p57 = scmp.eq.s32.totalorder %s17, 0
    %p58 = por %p56, %p57
    %s59 = sadd.s32 %s19, 1
    %s60 = smul.u32 %s59, 8
    %s61 = sadd.s32 %s26, 1
    %s62 = smul.u32 %s61, 8
    %s63 = ssub.s32 %s18, %s30
    %s64 = ssub.s32 %s60, %s62
    %s65 = sor.u32 %s63, %s64
    %p66 = scmp.eq.s32.totalorder %s65, 0
    %s68 = sadd.s32 %s67, 1
    %s69 = scalar_select %p66, %s67, %s68
    %p72 = pneg %p66
    %p73 = scmp.eq.s32.totalorder %s11, 3
    %p74 = por %p72, %p73
    %p75 = scmp.ne.s32.totalorder %s67, %s70
    %p76 = scmp.eq.s32.totalorder %s11, 0
    %p77 = por %p75, %p76
    %p78 = scmp.ne.s32.totalorder %s67, %s70
    %p79 = scmp.eq.s32.totalorder %s16, 3
    %p80 = por %p78, %p79
    %p81 = scmp.ne.s32.totalorder %s70, %s71
    %p82 = scmp.eq.s32.totalorder %s16, 0
    %p83 = por %p81, %p82
    %p84 = scmp.ne.s32.totalorder %s70, %s71
    %p85 = scmp.eq.s32.totalorder %s17, 3
    %p86 = por %p84, %p85
    %p88 = scmp.ne.s32.totalorder %s71, %s87
    %p89 = scmp.eq.s32.totalorder %s17, 0
    %p90 = por %p88, %p89
    %s91 = sadd.s32 %s19, 1
    %s92 = smul.u32 %s91, 8
    %s93 = sadd.s32 %s92, 1
    %s94 = sadd.s32 %s26, 1
    %s95 = smul.u32 %s94, 8
    %s96 = sadd.s32 %s95, 1
    %s97 = ssub.s32 %s18, %s30
    %s98 = ssub.s32 %s93, %s96
    %s99 = sor.u32 %s97, %s98
    %p100 = scmp.eq.s32.totalorder %s99, 0
    %s102 = sadd.s32 %s101, 1
    %s103 = scalar_select %p100, %s101, %s102
    %p106 = pneg %p100
    %p107 = scmp.eq.s32.totalorder %s11, 3
    %p108 = por %p106, %p107
    %p109 = scmp.ne.s32.totalorder %s101, %s104
    %p110 = scmp.eq.s32.totalorder %s11, 0
    %p111 = por %p109, %p110
    %p112 = scmp.ne.s32.totalorder %s101, %s104
    %p113 = scmp.eq.s32.totalorder %s16, 3
    %p114 = por %p112, %p113
    %p115 = scmp.ne.s32.totalorder %s104, %s105
    %p116 = scmp.eq.s32.totalorder %s16, 0
    %p117 = por %p115, %p116
    %p118 = scmp.ne.s32.totalorder %s104, %s105
    %p119 = scmp.eq.s32.totalorder %s17, 3
    %p120 = por %p118, %p119
    %p122 = scmp.ne.s32.totalorder %s105, %s121
    %p123 = scmp.eq.s32.totalorder %s17, 0
    %p124 = por %p122, %p123
    %s126 = sadd.s32 %s125, 1
    %p129 = scmp.eq.s32.totalorder %s11, 3
    %p130 = scmp.ne.s32.totalorder %s125, %s127
    %p131 = scmp.eq.s32.totalorder %s11, 0
    %p132 = por %p130, %p131
    %p133 = scmp.ne.s32.totalorder %s125, %s127
    %p134 = scmp.eq.s32.totalorder %s16, 3
    %p135 = por %p133, %p134
    %p136 = scmp.ne.s32.totalorder %s127, %s128
    %p137 = scmp.eq.s32.totalorder %s16, 0
    %p138 = por %p136, %p137
    %p139 = scmp.ne.s32.totalorder %s127, %s128
    %p140 = scmp.eq.s32.totalorder %s17, 3
    %p141 = por %p139, %p140
    %p143 = scmp.ne.s32.totalorder %s128, %s142
    %p144 = scmp.eq.s32.totalorder %s17, 0
    %p145 = por %p143, %p144
    %s147 = sadd.s32 %s146, 1
    %p150 = scmp.eq.s32.totalorder %s11, 3
    %p151 = scmp.ne.s32.totalorder %s146, %s148
    %p152 = scmp.eq.s32.totalorder %s11, 0
    %p153 = por %p151, %p152
    %p154 = scmp.ne.s32.totalorder %s146, %s148
    %p155 = scmp.eq.s32.totalorder %s16, 3
    %p156 = por %p154, %p155
    %p157 = scmp.ne.s32.totalorder %s148, %s149
    %p158 = scmp.eq.s32.totalorder %s16, 0
    %p159 = por %p157, %p158
    %p160 = scmp.ne.s32.totalorder %s148, %s149
    %p161 = scmp.eq.s32.totalorder %s17, 3
    %p162 = por %p160, %p161
    %p164 = scmp.ne.s32.totalorder %s149, %s163
    %p165 = scmp.eq.s32.totalorder %s17, 0
    %p166 = por %p164, %p165
    %s167 = ssub.s32 %s18, %s30
    %s168 = ssub.s32 %s19, %s26
    %s169 = sor.u32 %s167, %s168
    %p170 = scmp.eq.s32.totalorder %s169, 0
    %s172 = sadd.s32 %s171, 1
    %s173 = scalar_select %p170, %s171, %s172
    %p176 = pneg %p170
    %p177 = scmp.eq.s32.totalorder %s11, 3
    %p178 = por %p176, %p177
    %p179 = scmp.ne.s32.totalorder %s171, %s174
    %p180 = scmp.eq.s32.totalorder %s11, 0
    %p181 = por %p179, %p180
    %p182 = scmp.ne.s32.totalorder %s171, %s174
    %p183 = scmp.eq.s32.totalorder %s16, 3
    %p184 = por %p182, %p183
    %p185 = scmp.ne.s32.totalorder %s174, %s175
    %p186 = scmp.eq.s32.totalorder %s16, 0
    %p187 = por %p185, %p186
    %p188 = scmp.ne.s32.totalorder %s174, %s175
    %p189 = scmp.eq.s32.totalorder %s17, 3
    %p190 = por %p188, %p189
    %p192 = scmp.ne.s32.totalorder %s175, %s191
    %p193 = scmp.eq.s32.totalorder %s17, 0
    %p194 = por %p192, %p193
    %p195 = scmp.le.s32.totalorder 1, %s11
    %p196 = scmp.lt.s32.totalorder %s11, 5
    %p197 = pnand %p195, %p196
    %p198 = pneg %p197
    // Predicated region
    $region9: #{_lambda_.1} parent=5 // pred_check
      _
    $region10: #{_lambda_.1} parent=5 // pred_check_branch
      %200 = sbr.rel (%p197) target = $region12
    $region11: #{_lambda_.1} parent=5 // pred_region
      %s201 = ssub.s32 %s11, 1
      // Predicated region
      $region13: #{_lambda_.1} parent=11 // pred_check
        %p202 = pneg %p138
      $region14: #{_lambda_.1} parent=11 // pred_check_branch
        %204 = sbr.rel (%p202) target = $region16
      $region15: #{_lambda_.1} parent=11 // pred_region
        _
      $region16: #{_lambda_.1} parent=11 // pred_fallthru
        _
      // Predicated region
      $region17: #{_lambda_.1} parent=11 // pred_check
        %p205 = pneg %p159
      $region18: #{_lambda_.1} parent=11 // pred_check_branch
        %207 = sbr.rel (%p205) target = $region20
      $region19: #{_lambda_.1} parent=11 // pred_region
        _
      $region20: #{_lambda_.1} parent=11 // pred_fallthru
        _
    $region12: #{_lambda_.1} parent=5 // pred_fallthru
      _
    %p208 = scmp.lt.s32.totalorder %s11, 4
    // Predicated region
    $region21: #{_lambda_.1} parent=5 // pred_check
      %p209 = pneg %p208
    $region22: #{_lambda_.1} parent=5 // pred_check_branch
      %211 = sbr.rel (%p209) target = $region24
    $region23: #{_lambda_.1} parent=5 // pred_region
      // Predicated region
      $region25: #{_lambda_.1} parent=23 // pred_check
        %p212 = pneg %p45
      $region26: #{_lambda_.1} parent=23 // pred_check_branch
        %214 = sbr.rel (%p212) target = $region28
      $region27: #{_lambda_.1} parent=23 // pred_region
        %s215 = smul.u32 24, %s19
        %s216 = ssub.s32 54, %s215
        %p217 = scmp.lt.s32.totalorder %s216, 24
        %s218 = scalar_select %p217, %s216, 24
        %s219 = smul.u32 128, %s218
        %p220 = scmp.lt.s32.totalorder %s18, 1
        %s221 = scalar_select %p220, %s18, 1
        %p222 = scmp.lt.s32.totalorder %s215, 53
        %s223 = scalar_select %p222, %s215, 53
        %s224 = smul.addr %s221, 54
        %s225 = sadd.s32 %s223, %s224
        %s226 = smul.addr %s225, 8
        %s227 = scalar_lea.vmem %s0, %s226
        %s228 = smul.u32 24, %s19
        %s229 = ssub.s32 54, %s228
        %p230 = scmp.lt.s32.totalorder %s229, 24
        %s231 = scalar_select %p230, %s229, 24
        %s232 = smul.u32 128, %s231
      $region28: #{_lambda_.1} parent=23 // pred_fallthru
        _
      // Predicated region
      $region29: #{_lambda_.1} parent=23 // pred_check
        %p233 = pneg %p77
      $region30: #{_lambda_.1} parent=23 // pred_check_branch
        %235 = sbr.rel (%p233) target = $region32
      $region31: #{_lambda_.1} parent=23 // pred_region
        %s236 = sadd.s32 %s19, 1
        %s237 = smul.u32 %s236, 8
        %s238 = smul.u32 3, %s237
        %p239 = scmp.lt.s32.totalorder %s18, 1
        %s240 = scalar_select %p239, %s18, 1
        %p241 = scmp.lt.s32.totalorder %s238, 53
        %s242 = scalar_select %p241, %s238, 53
        %s243 = smul.addr %s240, 54
        %s244 = sadd.s32 %s242, %s243
        %s245 = smul.addr %s244, 8
        %s246 = scalar_lea.vmem %s1, %s245
        %s247 = sadd.s32 %s19, 1
        %s248 = smul.u32 %s247, 8
        %s249 = smul.u32 3, %s248
      $region32: #{_lambda_.1} parent=23 // pred_fallthru
        _
      // Predicated region
      $region33: #{_lambda_.1} parent=23 // pred_check
        %p250 = pneg %p111
      $region34: #{_lambda_.1} parent=23 // pred_check_branch
        %252 = sbr.rel (%p250) target = $region36
      $region35: #{_lambda_.1} parent=23 // pred_region
        %s253 = sadd.s32 %s19, 1
        %s254 = smul.u32 %s253, 8
        %s255 = sadd.s32 %s254, 1
        %s256 = smul.u32 3, %s255
        %p257 = scmp.lt.s32.totalorder %s18, 1
        %s258 = scalar_select %p257, %s18, 1
        %p259 = scmp.lt.s32.totalorder %s256, 53
        %s260 = scalar_select %p259, %s256, 53
        %s261 = smul.addr %s258, 54
        %s262 = sadd.s32 %s260, %s261
        %s263 = smul.addr %s262, 8
        %s264 = scalar_lea.vmem %s2, %s263
        %s265 = sadd.s32 %s19, 1
        %s266 = smul.u32 %s265, 8
        %s267 = sadd.s32 %s266, 1
        %s268 = smul.u32 3, %s267
      $region36: #{_lambda_.1} parent=23 // pred_fallthru
        _
    $region24: #{_lambda_.1} parent=5 // pred_fallthru
      _
    %p269 = scmp.le.s32.totalorder 1, %s11
    %p270 = scmp.lt.s32.totalorder %s11, 5
    %p271 = pnand %p269, %p270
    %p272 = pneg %p271
    // Predicated region
    $region37: #{_lambda_.1} parent=5 // pred_check
      _
    $region38: #{_lambda_.1} parent=5 // pred_check_branch
      %274 = sbr.rel (%p271) target = $region40
    $region39: #{_lambda_.1} parent=5 // pred_region
      %s275 = ssub.s32 %s11, 1
      %s276 = smul.u32 24, %s21
      %s277 = ssub.s32 54, %s276
      %p278 = scmp.lt.s32.totalorder %s277, 24
      %s279 = scalar_select %p278, %s277, 24
      %s280 = smul.u32 128, %s279
      %p281 = scmp.lt.s32.totalorder %s20, 1
      %s282 = scalar_select %p281, %s20, 1
      %p283 = scmp.lt.s32.totalorder %s276, 53
      %s284 = scalar_select %p283, %s276, 53
      %s285 = smul.addr %s282, 54
      %s286 = sadd.s32 %s284, %s285
      %s287 = smul.addr %s286, 8
      %s288 = scalar_lea.vmem %s0, %s287
      %p289 = pneg %p51
      %p290 = pneg %p48
      %s291 = sadd.s32 %s21, 1
      %s292 = smul.u32 %s291, 8
      %s293 = smul.u32 3, %s292
      %p294 = scmp.lt.s32.totalorder %s20, 1
      %s295 = scalar_select %p294, %s20, 1
      %p296 = scmp.lt.s32.totalorder %s293, 53
      %s297 = scalar_select %p296, %s293, 53
      %s298 = smul.addr %s295, 54
      %s299 = sadd.s32 %s297, %s298
      %s300 = smul.addr %s299, 8
      %s301 = scalar_lea.vmem %s1, %s300
      %p302 = pneg %p83
      %p303 = pneg %p80
      %s304 = sadd.s32 %s21, 1
      %s305 = smul.u32 %s304, 8
      %s306 = sadd.s32 %s305, 1
      %s307 = smul.u32 3, %s306
      %p308 = scmp.lt.s32.totalorder %s20, 1
      %s309 = scalar_select %p308, %s20, 1
      %p310 = scmp.lt.s32.totalorder %s307, 53
      %s311 = scalar_select %p310, %s307, 53
      %s312 = smul.addr %s309, 54
      %s313 = sadd.s32 %s311, %s312
      %s314 = smul.addr %s313, 8
      %s315 = scalar_lea.vmem %s2, %s314
      %p316 = pneg %p117
      %p317 = pneg %p114
      %p318 = pneg %p138
      %p319 = pneg %p135
      %p320 = pneg %p159
      %p321 = pneg %p156
      %p322 = pneg %p187
      %p323 = pneg %p184
      %s324 = smul.u32 24, %s21
      %p325 = scmp.lt.s32.totalorder %s20, 1
      %s326 = scalar_select %p325, %s20, 1
      %p327 = scmp.lt.s32.totalorder %s324, 47
      %s328 = scalar_select %p327, %s324, 47
      %s329 = smul.addr %s326, 48
      %s330 = sadd.s32 %s328, %s329
      %s331 = smul.addr %s330, 8
      %s332 = scalar_lea.vmem %s5, %s331
      %s333 = smul.u32 24, %s21
      %s334 = ssub.s32 54, %s333
      %p335 = scmp.lt.s32.totalorder %s334, 24
      %s336 = scalar_select %p335, %s334, 24
      %s337 = smul.u32 128, %s336
      %p338 = scmp.lt.s32.totalorder %s20, 1
      %s339 = scalar_select %p338, %s20, 1
      %p340 = scmp.lt.s32.totalorder %s333, 53
      %s341 = scalar_select %p340, %s333, 53
      %s342 = smul.addr %s339, 54
      %s343 = sadd.s32 %s341, %s342
      %s344 = smul.addr %s343, 8
      %s345 = scalar_lea.vmem %s0, %s344
      %s346 = smul.u32 24, %s21
      %s347 = ssub.s32 54, %s346
      %p348 = scmp.lt.s32.totalorder %s347, 24
      %s349 = scalar_select %p348, %s347, 24
      %s350 = smul.u32 128, %s349
      %s351 = sadd.s32 %s21, 1
      %s352 = smul.u32 %s351, 8
      %s353 = smul.u32 3, %s352
      %p354 = scmp.lt.s32.totalorder %s20, 1
      %s355 = scalar_select %p354, %s20, 1
      %p356 = scmp.lt.s32.totalorder %s353, 53
      %s357 = scalar_select %p356, %s353, 53
      %s358 = smul.addr %s355, 54
      %s359 = sadd.s32 %s357, %s358
      %s360 = smul.addr %s359, 8
      %s361 = scalar_lea.vmem %s1, %s360
      %s362 = sadd.s32 %s21, 1
      %s363 = smul.u32 %s362, 8
      %s364 = smul.u32 3, %s363
      %s365 = sadd.s32 %s21, 1
      %s366 = smul.u32 %s365, 8
      %s367 = sadd.s32 %s366, 1
      %s368 = smul.u32 3, %s367
      %p369 = scmp.lt.s32.totalorder %s20, 1
      %s370 = scalar_select %p369, %s20, 1
      %p371 = scmp.lt.s32.totalorder %s368, 53
      %s372 = scalar_select %p371, %s368, 53
      %s373 = smul.addr %s370, 54
      %s374 = sadd.s32 %s372, %s373
      %s375 = smul.addr %s374, 8
      %s376 = scalar_lea.vmem %s2, %s375
      %s377 = sadd.s32 %s21, 1
      %s378 = smul.u32 %s377, 8
      %s379 = sadd.s32 %s378, 1
      %s380 = smul.u32 3, %s379
      %s381 = smul.u32 24, %s21
      %p382 = scmp.lt.s32.totalorder %s20, 1
      %s383 = scalar_select %p382, %s20, 1
      %p384 = scmp.lt.s32.totalorder %s381, 47
      %s385 = scalar_select %p384, %s381, 47
      %s386 = smul.addr %s383, 48
      %s387 = sadd.s32 %s385, %s386
      %s388 = smul.addr %s387, 8
      %s389 = scalar_lea.vmem %s5, %s388
      %s390 = smul.u32 24, %s21
      %v391 = vld [vmem:[%s345] sm:$0xff]
      %v392 = vld [vmem:[%s345 + $0x8] sm:$0xff]
      %v393 = vld [vmem:[%s345 + $0x10] sm:$0xff]
      %v394 = vld [vmem:[%s345 + $0x18] sm:$0xff]
      %v395 = vld [vmem:[%s345 + $0x20] sm:$0xff]
      %v396 = vld [vmem:[%s345 + $0x28] sm:$0xff]
      %v397 = vld [vmem:[%s345 + $0x30] sm:$0xff]
      %v398 = vld [vmem:[%s345 + $0x38] sm:$0xff]
      %v399 = vld [vmem:[%s345 + $0x40] sm:$0xff]
      %v400 = vld [vmem:[%s345 + $0x48] sm:$0xff]
      %v401 = vld [vmem:[%s345 + $0x50] sm:$0xff]
      %v402 = vld [vmem:[%s345 + $0x58] sm:$0xff]
      %v403 = vld [vmem:[%s345 + $0x60] sm:$0xff]
      %v404 = vld [vmem:[%s345 + $0x68] sm:$0xff]
      %v405 = vld [vmem:[%s345 + $0x70] sm:$0xff]
      %v406 = vld [vmem:[%s345 + $0x78] sm:$0xff]
      %v407 = vld [vmem:[%s345 + $0x80] sm:$0xff]
      %v408 = vld [vmem:[%s345 + $0x88] sm:$0xff]
      %v409 = vld [vmem:[%s345 + $0x90] sm:$0xff]
      %v410 = vld [vmem:[%s345 + $0x98] sm:$0xff]
      %v411 = vld [vmem:[%s345 + $0xa0] sm:$0xff]
      %v412 = vld [vmem:[%s345 + $0xa8] sm:$0xff]
      %v413 = vld [vmem:[%s345 + $0xb0] sm:$0xff]
      %v414 = vld [vmem:[%s345 + $0xb8] sm:$0xff]
      %v415 = vld [vmem:[%s361] sm:$0xff]
      %v416 = vld [vmem:[%s361 + $0x8] sm:$0xff]
      %v417 = vld [vmem:[%s361 + $0x10] sm:$0xff]
      %v418 = vld [vmem:[%s376] sm:$0xff]
      %v419 = vld [vmem:[%s376 + $0x8] sm:$0xff]
      %v420 = vld [vmem:[%s376 + $0x10] sm:$0xff]
      %v421 = vrot.slane %v391, 1
      %v422 = vrot.slane %v392, 1
      %v423 = vrot.slane %v393, 1
      %v424 = vrot.slane %v394, 1
      %v425 = vrot.slane %v395, 1
      %v426 = vrot.slane %v396, 1
      %v427 = vrot.slane %v397, 1
      %v428 = vrot.slane %v398, 1
      %v429 = vrot.slane %v399, 1
      %v430 = vrot.slane %v400, 1
      %v431 = vrot.slane %v401, 1
      %v432 = vrot.slane %v402, 1
      %v433 = vrot.slane %v403, 1
      %v434 = vrot.slane %v404, 1
      %v435 = vrot.slane %v405, 1
      %v436 = vrot.slane %v406, 1
      %v437 = vrot.slane %v407, 1
      %v438 = vrot.slane %v408, 1
      %v439 = vrot.slane %v409, 1
      %v440 = vrot.slane %v410, 1
      %v441 = vrot.slane %v411, 1
      %v442 = vrot.slane %v412, 1
      %v443 = vrot.slane %v413, 1
      %v444 = vrot.slane %v414, 1
      %v445 = vrot.slane %v415, 1
      %v446 = vrot.slane %v416, 1
      %v447 = vrot.slane %v417, 1
      %v448 = vrot.slane %v418, 1
      %v449 = vrot.slane %v419, 1
      %v450 = vrot.slane %v420, 1
      %v451 = vlaneseq
      %v452 = vshrl.u32 %v451, 7
      %vm453 = vcmp.lt.s32.totalorder %v452, 7
      %v454 = vsel %vm453, %v449, %v450
      %v455 = vsel %vm453, %v448, %v449
      %v456 = vsel %vm453, %v447, %v448
      %v457 = vsel %vm453, %v446, %v447
      %v458 = vsel %vm453, %v445, %v446
      %v459 = vsel %vm453, %v444, %v445
      %v460 = vsel %vm453, %v443, %v444
      %v461 = vsel %vm453, %v442, %v443
      %v462 = vsel %vm453, %v441, %v442
      %v463 = vsel %vm453, %v440, %v441
      %v464 = vsel %vm453, %v439, %v440
      %v465 = vsel %vm453, %v438, %v439
      %v466 = vsel %vm453, %v437, %v438
      %v467 = vsel %vm453, %v436, %v437
      %v468 = vsel %vm453, %v435, %v436
      %v469 = vsel %vm453, %v434, %v435
      %v470 = vsel %vm453, %v433, %v434
      %v471 = vsel %vm453, %v432, %v433
      %v472 = vsel %vm453, %v431, %v432
      %v473 = vsel %vm453, %v430, %v431
      %v474 = vsel %vm453, %v429, %v430
      %v475 = vsel %vm453, %v428, %v429
      %v476 = vsel %vm453, %v427, %v428
      %v477 = vsel %vm453, %v426, %v427
      %v478 = vsel %vm453, %v425, %v426
      %v479 = vsel %vm453, %v424, %v425
      %v480 = vsel %vm453, %v423, %v424
      %v481 = vsel %vm453, %v422, %v423
      %v482 = vsel %vm453, %v421, %v422
      %v483 = vsel %vm453, %v450, %v421
      %v484 = vrot.slane %v391, 2
      %v485 = vrot.slane %v392, 2
      %v486 = vrot.slane %v393, 2
      %v487 = vrot.slane %v394, 2
      %v488 = vrot.slane %v395, 2
      %v489 = vrot.slane %v396, 2
      %v490 = vrot.slane %v397, 2
      %v491 = vrot.slane %v398, 2
      %v492 = vrot.slane %v399, 2
      %v493 = vrot.slane %v400, 2
      %v494 = vrot.slane %v401, 2
      %v495 = vrot.slane %v402, 2
      %v496 = vrot.slane %v403, 2
      %v497 = vrot.slane %v404, 2
      %v498 = vrot.slane %v405, 2
      %v499 = vrot.slane %v406, 2
      %v500 = vrot.slane %v407, 2
      %v501 = vrot.slane %v408, 2
      %v502 = vrot.slane %v409, 2
      %v503 = vrot.slane %v410, 2
      %v504 = vrot.slane %v411, 2
      %v505 = vrot.slane %v412, 2
      %v506 = vrot.slane %v413, 2
      %v507 = vrot.slane %v414, 2
      %v508 = vrot.slane %v415, 2
      %v509 = vrot.slane %v416, 2
      %v510 = vrot.slane %v417, 2
      %v511 = vrot.slane %v418, 2
      %v512 = vrot.slane %v419, 2
      %v513 = vrot.slane %v420, 2
      %vm514 = vcmp.lt.s32.totalorder %v452, 6
      %v515 = vsel %vm514, %v512, %v513
      %v516 = vsel %vm514, %v511, %v512
      %v517 = vsel %vm514, %v510, %v511
      %v518 = vsel %vm514, %v509, %v510
      %v519 = vsel %vm514, %v508, %v509
      %v520 = vsel %vm514, %v507, %v508
      %v521 = vsel %vm514, %v506, %v507
      %v522 = vsel %vm514, %v505, %v506
      %v523 = vsel %vm514, %v504, %v505
      %v524 = vsel %vm514, %v503, %v504
      %v525 = vsel %vm514, %v502, %v503
      %v526 = vsel %vm514, %v501, %v502
      %v527 = vsel %vm514, %v500, %v501
      %v528 = vsel %vm514, %v499, %v500
      %v529 = vsel %vm514, %v498, %v499
      %v530 = vsel %vm514, %v497, %v498
      %v531 = vsel %vm514, %v496, %v497
      %v532 = vsel %vm514, %v495, %v496
      %v533 = vsel %vm514, %v494, %v495
      %v534 = vsel %vm514, %v493, %v494
      %v535 = vsel %vm514, %v492, %v493
      %v536 = vsel %vm514, %v491, %v492
      %v537 = vsel %vm514, %v490, %v491
      %v538 = vsel %vm514, %v489, %v490
      %v539 = vsel %vm514, %v488, %v489
      %v540 = vsel %vm514, %v487, %v488
      %v541 = vsel %vm514, %v486, %v487
      %v542 = vsel %vm514, %v485, %v486
      %v543 = vsel %vm514, %v484, %v485
      %v544 = vsel %vm514, %v513, %v484
      %569 = vrot.lane.b32.xlu0 %v482, 4
      %v570 = vpop.permute.xlu0 %569
      %571 = vrot.lane.b32.xlu0 %v481, 4
      %v572 = vpop.permute.xlu0 %571
      %573 = vrot.lane.b32.xlu0 %v480, 4
      %v574 = vpop.permute.xlu0 %573
      %575 = vrot.lane.b32.xlu0 %v479, 4
      %v576 = vpop.permute.xlu0 %575
      %577 = vrot.lane.b32.xlu0 %v478, 4
      %v578 = vpop.permute.xlu0 %577
      %579 = vrot.lane.b32.xlu0 %v477, 4
      %v580 = vpop.permute.xlu0 %579
      %581 = vrot.lane.b32.xlu0 %v476, 4
      %v582 = vpop.permute.xlu0 %581
      %583 = vrot.lane.b32.xlu0 %v475, 4
      %v584 = vpop.permute.xlu0 %583
      %585 = vrot.lane.b32.xlu0 %v474, 4
      %v586 = vpop.permute.xlu0 %585
      %587 = vrot.lane.b32.xlu0 %v473, 4
      %v588 = vpop.permute.xlu0 %587
      %589 = vrot.lane.b32.xlu0 %v472, 4
      %v590 = vpop.permute.xlu0 %589
      %591 = vrot.lane.b32.xlu0 %v471, 4
      %v592 = vpop.permute.xlu0 %591
      %593 = vrot.lane.b32.xlu0 %v470, 4
      %v594 = vpop.permute.xlu0 %593
      %595 = vrot.lane.b32.xlu0 %v469, 4
      %v596 = vpop.permute.xlu0 %595
      %597 = vrot.lane.b32.xlu0 %v468, 4
      %v598 = vpop.permute.xlu0 %597
      %599 = vrot.lane.b32.xlu0 %v467, 4
      %v600 = vpop.permute.xlu0 %599
      %601 = vrot.lane.b32.xlu0 %v466, 4
      %v602 = vpop.permute.xlu0 %601
      %603 = vrot.lane.b32.xlu0 %v465, 4
      %v604 = vpop.permute.xlu0 %603
      %605 = vrot.lane.b32.xlu0 %v464, 4
      %v606 = vpop.permute.xlu0 %605
      %607 = vrot.lane.b32.xlu0 %v463, 4
      %v608 = vpop.permute.xlu0 %607
      %609 = vrot.lane.b32.xlu0 %v462, 4
      %v610 = vpop.permute.xlu0 %609
      %611 = vrot.lane.b32.xlu0 %v461, 4
      %v612 = vpop.permute.xlu0 %611
      %613 = vrot.lane.b32.xlu0 %v460, 4
      %v614 = vpop.permute.xlu0 %613
      %615 = vrot.lane.b32.xlu0 %v459, 4
      %v616 = vpop.permute.xlu0 %615
      %665 = vrot.lane.b32.xlu0 %v543, 8
      %v666 = vpop.permute.xlu0 %665
      %667 = vrot.lane.b32.xlu0 %v542, 8
      %v668 = vpop.permute.xlu0 %667
      %669 = vrot.lane.b32.xlu0 %v541, 8
      %v670 = vpop.permute.xlu0 %669
      %671 = vrot.lane.b32.xlu0 %v540, 8
      %v672 = vpop.permute.xlu0 %671
      %673 = vrot.lane.b32.xlu0 %v539, 8
      %v674 = vpop.permute.xlu0 %673
      %675 = vrot.lane.b32.xlu0 %v538, 8
      %v676 = vpop.permute.xlu0 %675
      %677 = vrot.lane.b32.xlu0 %v537, 8
      %v678 = vpop.permute.xlu0 %677
      %679 = vrot.lane.b32.xlu0 %v536, 8
      %v680 = vpop.permute.xlu0 %679
      %681 = vrot.lane.b32.xlu0 %v535, 8
      %v682 = vpop.permute.xlu0 %681
      %683 = vrot.lane.b32.xlu0 %v534, 8
      %v684 = vpop.permute.xlu0 %683
      %685 = vrot.lane.b32.xlu0 %v533, 8
      %v686 = vpop.permute.xlu0 %685
      %687 = vrot.lane.b32.xlu0 %v532, 8
      %v688 = vpop.permute.xlu0 %687
      %689 = vrot.lane.b32.xlu0 %v531, 8
      %v690 = vpop.permute.xlu0 %689
      %691 = vrot.lane.b32.xlu0 %v530, 8
      %v692 = vpop.permute.xlu0 %691
      %693 = vrot.lane.b32.xlu0 %v529, 8
      %v694 = vpop.permute.xlu0 %693
      %695 = vrot.lane.b32.xlu0 %v528, 8
      %v696 = vpop.permute.xlu0 %695
      %697 = vrot.lane.b32.xlu0 %v527, 8
      %v698 = vpop.permute.xlu0 %697
      %699 = vrot.lane.b32.xlu0 %v526, 8
      %v700 = vpop.permute.xlu0 %699
      %701 = vrot.lane.b32.xlu0 %v525, 8
      %v702 = vpop.permute.xlu0 %701
      %703 = vrot.lane.b32.xlu0 %v524, 8
      %v704 = vpop.permute.xlu0 %703
      %705 = vrot.lane.b32.xlu0 %v523, 8
      %v706 = vpop.permute.xlu0 %705
      %707 = vrot.lane.b32.xlu0 %v522, 8
      %v708 = vpop.permute.xlu0 %707
      %709 = vrot.lane.b32.xlu0 %v521, 8
      %v710 = vpop.permute.xlu0 %709
      %711 = vrot.lane.b32.xlu0 %v520, 8
      %v712 = vpop.permute.xlu0 %711
      %761 = vrot.lane.b32.xlu0 %v394, 12
      %v762 = vpop.permute.xlu0 %761
      %763 = vrot.lane.b32.xlu0 %v395, 12
      %v764 = vpop.permute.xlu0 %763
      %765 = vrot.lane.b32.xlu0 %v396, 12
      %v766 = vpop.permute.xlu0 %765
      %767 = vrot.lane.b32.xlu0 %v397, 12
      %v768 = vpop.permute.xlu0 %767
      %769 = vrot.lane.b32.xlu0 %v398, 12
      %v770 = vpop.permute.xlu0 %769
      %771 = vrot.lane.b32.xlu0 %v399, 12
      %v772 = vpop.permute.xlu0 %771
      %773 = vrot.lane.b32.xlu0 %v400, 12
      %v774 = vpop.permute.xlu0 %773
      %775 = vrot.lane.b32.xlu0 %v401, 12
      %v776 = vpop.permute.xlu0 %775
      %777 = vrot.lane.b32.xlu0 %v402, 12
      %v778 = vpop.permute.xlu0 %777
      %779 = vrot.lane.b32.xlu0 %v403, 12
      %v780 = vpop.permute.xlu0 %779
      %781 = vrot.lane.b32.xlu0 %v404, 12
      %v782 = vpop.permute.xlu0 %781
      %783 = vrot.lane.b32.xlu0 %v405, 12
      %v784 = vpop.permute.xlu0 %783
      %785 = vrot.lane.b32.xlu0 %v406, 12
      %v786 = vpop.permute.xlu0 %785
      %787 = vrot.lane.b32.xlu0 %v407, 12
      %v788 = vpop.permute.xlu0 %787
      %789 = vrot.lane.b32.xlu0 %v408, 12
      %v790 = vpop.permute.xlu0 %789
      %791 = vrot.lane.b32.xlu0 %v409, 12
      %v792 = vpop.permute.xlu0 %791
      %793 = vrot.lane.b32.xlu0 %v410, 12
      %v794 = vpop.permute.xlu0 %793
      %795 = vrot.lane.b32.xlu0 %v411, 12
      %v796 = vpop.permute.xlu0 %795
      %797 = vrot.lane.b32.xlu0 %v412, 12
      %v798 = vpop.permute.xlu0 %797
      %799 = vrot.lane.b32.xlu0 %v413, 12
      %v800 = vpop.permute.xlu0 %799
      %801 = vrot.lane.b32.xlu0 %v414, 12
      %v802 = vpop.permute.xlu0 %801
      %803 = vrot.lane.b32.xlu0 %v415, 12
      %v804 = vpop.permute.xlu0 %803
      %805 = vrot.lane.b32.xlu0 %v416, 12
      %v806 = vpop.permute.xlu0 %805
      %807 = vrot.lane.b32.xlu0 %v417, 12
      %v808 = vpop.permute.xlu0 %807
      %836 = vrot.lane.b32.xlu0 %v479, 16
      %v837 = vpop.permute.xlu0 %836
      %838 = vrot.lane.b32.xlu0 %v478, 16
      %v839 = vpop.permute.xlu0 %838
      %840 = vrot.lane.b32.xlu0 %v477, 16
      %v841 = vpop.permute.xlu0 %840
      %842 = vrot.lane.b32.xlu0 %v476, 16
      %v843 = vpop.permute.xlu0 %842
      %844 = vrot.lane.b32.xlu0 %v475, 16
      %v845 = vpop.permute.xlu0 %844
      %846 = vrot.lane.b32.xlu0 %v474, 16
      %v847 = vpop.permute.xlu0 %846
      %848 = vrot.lane.b32.xlu0 %v473, 16
      %v849 = vpop.permute.xlu0 %848
      %850 = vrot.lane.b32.xlu0 %v472, 16
      %v851 = vpop.permute.xlu0 %850
      %852 = vrot.lane.b32.xlu0 %v471, 16
      %v853 = vpop.permute.xlu0 %852
      %854 = vrot.lane.b32.xlu0 %v470, 16
      %v855 = vpop.permute.xlu0 %854
      %856 = vrot.lane.b32.xlu0 %v469, 16
      %v857 = vpop.permute.xlu0 %856
      %858 = vrot.lane.b32.xlu0 %v468, 16
      %v859 = vpop.permute.xlu0 %858
      %860 = vrot.lane.b32.xlu0 %v467, 16
      %v861 = vpop.permute.xlu0 %860
      %862 = vrot.lane.b32.xlu0 %v466, 16
      %v863 = vpop.permute.xlu0 %862
      %864 = vrot.lane.b32.xlu0 %v465, 16
      %v865 = vpop.permute.xlu0 %864
      %866 = vrot.lane.b32.xlu0 %v464, 16
      %v867 = vpop.permute.xlu0 %866
      %868 = vrot.lane.b32.xlu0 %v463, 16
      %v869 = vpop.permute.xlu0 %868
      %870 = vrot.lane.b32.xlu0 %v462, 16
      %v871 = vpop.permute.xlu0 %870
      %872 = vrot.lane.b32.xlu0 %v461, 16
      %v873 = vpop.permute.xlu0 %872
      %874 = vrot.lane.b32.xlu0 %v460, 16
      %v875 = vpop.permute.xlu0 %874
      %876 = vrot.lane.b32.xlu0 %v459, 16
      %v877 = vpop.permute.xlu0 %876
      %878 = vrot.lane.b32.xlu0 %v458, 16
      %v879 = vpop.permute.xlu0 %878
      %880 = vrot.lane.b32.xlu0 %v457, 16
      %v881 = vpop.permute.xlu0 %880
      %882 = vrot.lane.b32.xlu0 %v456, 16
      %v883 = vpop.permute.xlu0 %882
      %911 = vrot.lane.b32.xlu0 %v540, 20
      %v912 = vpop.permute.xlu0 %911
      %913 = vrot.lane.b32.xlu0 %v539, 20
      %v914 = vpop.permute.xlu0 %913
      %915 = vrot.lane.b32.xlu0 %v538, 20
      %v916 = vpop.permute.xlu0 %915
      %917 = vrot.lane.b32.xlu0 %v537, 20
      %v918 = vpop.permute.xlu0 %917
      %919 = vrot.lane.b32.xlu0 %v536, 20
      %v920 = vpop.permute.xlu0 %919
      %921 = vrot.lane.b32.xlu0 %v535, 20
      %v922 = vpop.permute.xlu0 %921
      %923 = vrot.lane.b32.xlu0 %v534, 20
      %v924 = vpop.permute.xlu0 %923
      %925 = vrot.lane.b32.xlu0 %v533, 20
      %v926 = vpop.permute.xlu0 %925
      %927 = vrot.lane.b32.xlu0 %v532, 20
      %v928 = vpop.permute.xlu0 %927
      %929 = vrot.lane.b32.xlu0 %v531, 20
      %v930 = vpop.permute.xlu0 %929
      %931 = vrot.lane.b32.xlu0 %v530, 20
      %v932 = vpop.permute.xlu0 %931
      %933 = vrot.lane.b32.xlu0 %v529, 20
      %v934 = vpop.permute.xlu0 %933
      %935 = vrot.lane.b32.xlu0 %v528, 20
      %v936 = vpop.permute.xlu0 %935
      %937 = vrot.lane.b32.xlu0 %v527, 20
      %v938 = vpop.permute.xlu0 %937
      %939 = vrot.lane.b32.xlu0 %v526, 20
      %v940 = vpop.permute.xlu0 %939
      %941 = vrot.lane.b32.xlu0 %v525, 20
      %v942 = vpop.permute.xlu0 %941
      %943 = vrot.lane.b32.xlu0 %v524, 20
      %v944 = vpop.permute.xlu0 %943
      %945 = vrot.lane.b32.xlu0 %v523, 20
      %v946 = vpop.permute.xlu0 %945
      %947 = vrot.lane.b32.xlu0 %v522, 20
      %v948 = vpop.permute.xlu0 %947
      %949 = vrot.lane.b32.xlu0 %v521, 20
      %v950 = vpop.permute.xlu0 %949
      %951 = vrot.lane.b32.xlu0 %v520, 20
      %v952 = vpop.permute.xlu0 %951
      %953 = vrot.lane.b32.xlu0 %v519, 20
      %v954 = vpop.permute.xlu0 %953
      %955 = vrot.lane.b32.xlu0 %v518, 20
      %v956 = vpop.permute.xlu0 %955
      %957 = vrot.lane.b32.xlu0 %v517, 20
      %v958 = vpop.permute.xlu0 %957
      %986 = vrot.lane.b32.xlu0 %v397, 24
      %v987 = vpop.permute.xlu0 %986
      %988 = vrot.lane.b32.xlu0 %v398, 24
      %v989 = vpop.permute.xlu0 %988
      %990 = vrot.lane.b32.xlu0 %v399, 24
      %v991 = vpop.permute.xlu0 %990
      %992 = vrot.lane.b32.xlu0 %v400, 24
      %v993 = vpop.permute.xlu0 %992
      %994 = vrot.lane.b32.xlu0 %v401, 24
      %v995 = vpop.permute.xlu0 %994
      %996 = vrot.lane.b32.xlu0 %v402, 24
      %v997 = vpop.permute.xlu0 %996
      %998 = vrot.lane.b32.xlu0 %v403, 24
      %v999 = vpop.permute.xlu0 %998
      %1000 = vrot.lane.b32.xlu0 %v404, 24
      %v1001 = vpop.permute.xlu0 %1000
      %1002 = vrot.lane.b32.xlu0 %v405, 24
      %v1003 = vpop.permute.xlu0 %1002
      %1004 = vrot.lane.b32.xlu0 %v406, 24
      %v1005 = vpop.permute.xlu0 %1004
      %1006 = vrot.lane.b32.xlu0 %v407, 24
      %v1007 = vpop.permute.xlu0 %1006
      %1008 = vrot.lane.b32.xlu0 %v408, 24
      %v1009 = vpop.permute.xlu0 %1008
      %1010 = vrot.lane.b32.xlu0 %v409, 24
      %v1011 = vpop.permute.xlu0 %1010
      %1012 = vrot.lane.b32.xlu0 %v410, 24
      %v1013 = vpop.permute.xlu0 %1012
      %1014 = vrot.lane.b32.xlu0 %v411, 24
      %v1015 = vpop.permute.xlu0 %1014
      %1016 = vrot.lane.b32.xlu0 %v412, 24
      %v1017 = vpop.permute.xlu0 %1016
      %1018 = vrot.lane.b32.xlu0 %v413, 24
      %v1019 = vpop.permute.xlu0 %1018
      %1020 = vrot.lane.b32.xlu0 %v414, 24
      %v1021 = vpop.permute.xlu0 %1020
      %1022 = vrot.lane.b32.xlu0 %v415, 24
      %v1023 = vpop.permute.xlu0 %1022
      %1024 = vrot.lane.b32.xlu0 %v416, 24
      %v1025 = vpop.permute.xlu0 %1024
      %1026 = vrot.lane.b32.xlu0 %v417, 24
      %v1027 = vpop.permute.xlu0 %1026
      %1028 = vrot.lane.b32.xlu0 %v418, 24
      %v1029 = vpop.permute.xlu0 %1028
      %1030 = vrot.lane.b32.xlu0 %v419, 24
      %v1031 = vpop.permute.xlu0 %1030
      %1032 = vrot.lane.b32.xlu0 %v420, 24
      %v1033 = vpop.permute.xlu0 %1032
      %1061 = vrot.lane.b32.xlu0 %v476, 28
      %v1062 = vpop.permute.xlu0 %1061
      %1063 = vrot.lane.b32.xlu0 %v475, 28
      %v1064 = vpop.permute.xlu0 %1063
      %1065 = vrot.lane.b32.xlu0 %v474, 28
      %v1066 = vpop.permute.xlu0 %1065
      %1067 = vrot.lane.b32.xlu0 %v473, 28
      %v1068 = vpop.permute.xlu0 %1067
      %1069 = vrot.lane.b32.xlu0 %v472, 28
      %v1070 = vpop.permute.xlu0 %1069
      %1071 = vrot.lane.b32.xlu0 %v471, 28
      %v1072 = vpop.permute.xlu0 %1071
      %1073 = vrot.lane.b32.xlu0 %v470, 28
      %v1074 = vpop.permute.xlu0 %1073
      %1075 = vrot.lane.b32.xlu0 %v469, 28
      %v1076 = vpop.permute.xlu0 %1075
      %1077 = vrot.lane.b32.xlu0 %v468, 28
      %v1078 = vpop.permute.xlu0 %1077
      %1079 = vrot.lane.b32.xlu0 %v467, 28
      %v1080 = vpop.permute.xlu0 %1079
      %1081 = vrot.lane.b32.xlu0 %v466, 28
      %v1082 = vpop.permute.xlu0 %1081
      %1083 = vrot.lane.b32.xlu0 %v465, 28
      %v1084 = vpop.permute.xlu0 %1083
      %1085 = vrot.lane.b32.xlu0 %v464, 28
      %v1086 = vpop.permute.xlu0 %1085
      %1087 = vrot.lane.b32.xlu0 %v463, 28
      %v1088 = vpop.permute.xlu0 %1087
      %1089 = vrot.lane.b32.xlu0 %v462, 28
      %v1090 = vpop.permute.xlu0 %1089
      %1091 = vrot.lane.b32.xlu0 %v461, 28
      %v1092 = vpop.permute.xlu0 %1091
      %1093 = vrot.lane.b32.xlu0 %v460, 28
      %v1094 = vpop.permute.xlu0 %1093
      %1095 = vrot.lane.b32.xlu0 %v459, 28
      %v1096 = vpop.permute.xlu0 %1095
      %1097 = vrot.lane.b32.xlu0 %v458, 28
      %v1098 = vpop.permute.xlu0 %1097
      %1099 = vrot.lane.b32.xlu0 %v457, 28
      %v1100 = vpop.permute.xlu0 %1099
      %1101 = vrot.lane.b32.xlu0 %v456, 28
      %v1102 = vpop.permute.xlu0 %1101
      %1103 = vrot.lane.b32.xlu0 %v455, 28
      %v1104 = vpop.permute.xlu0 %1103
      %1105 = vrot.lane.b32.xlu0 %v454, 28
      %v1106 = vpop.permute.xlu0 %1105
      %1107 = vrot.lane.b32.xlu0 %v483, 28
      %v1108 = vpop.permute.xlu0 %1107
      %1136 = vrot.lane.b32.xlu0 %v537, 32
      %v1137 = vpop.permute.xlu0 %1136
      %1138 = vrot.lane.b32.xlu0 %v536, 32
      %v1139 = vpop.permute.xlu0 %1138
      %1140 = vrot.lane.b32.xlu0 %v535, 32
      %v1141 = vpop.permute.xlu0 %1140
      %1142 = vrot.lane.b32.xlu0 %v534, 32
      %v1143 = vpop.permute.xlu0 %1142
      %1144 = vrot.lane.b32.xlu0 %v533, 32
      %v1145 = vpop.permute.xlu0 %1144
      %1146 = vrot.lane.b32.xlu0 %v532, 32
      %v1147 = vpop.permute.xlu0 %1146
      %1148 = vrot.lane.b32.xlu0 %v531, 32
      %v1149 = vpop.permute.xlu0 %1148
      %1150 = vrot.lane.b32.xlu0 %v530, 32
      %v1151 = vpop.permute.xlu0 %1150
      %1152 = vrot.lane.b32.xlu0 %v529, 32
      %v1153 = vpop.permute.xlu0 %1152
      %1154 = vrot.lane.b32.xlu0 %v528, 32
      %v1155 = vpop.permute.xlu0 %1154
      %1156 = vrot.lane.b32.xlu0 %v527, 32
      %v1157 = vpop.permute.xlu0 %1156
      %1158 = vrot.lane.b32.xlu0 %v526, 32
      %v1159 = vpop.permute.xlu0 %1158
      %1160 = vrot.lane.b32.xlu0 %v525, 32
      %v1161 = vpop.permute.xlu0 %1160
      %1162 = vrot.lane.b32.xlu0 %v524, 32
      %v1163 = vpop.permute.xlu0 %1162
      %1164 = vrot.lane.b32.xlu0 %v523, 32
      %v1165 = vpop.permute.xlu0 %1164
      %1166 = vrot.lane.b32.xlu0 %v522, 32
      %v1167 = vpop.permute.xlu0 %1166
      %1168 = vrot.lane.b32.xlu0 %v521, 32
      %v1169 = vpop.permute.xlu0 %1168
      %1170 = vrot.lane.b32.xlu0 %v520, 32
      %v1171 = vpop.permute.xlu0 %1170
      %1172 = vrot.lane.b32.xlu0 %v519, 32
      %v1173 = vpop.permute.xlu0 %1172
      %1174 = vrot.lane.b32.xlu0 %v518, 32
      %v1175 = vpop.permute.xlu0 %1174
      %1176 = vrot.lane.b32.xlu0 %v517, 32
      %v1177 = vpop.permute.xlu0 %1176
      %1178 = vrot.lane.b32.xlu0 %v516, 32
      %v1179 = vpop.permute.xlu0 %1178
      %1180 = vrot.lane.b32.xlu0 %v515, 32
      %v1181 = vpop.permute.xlu0 %1180
      %1182 = vrot.lane.b32.xlu0 %v544, 32
      %v1183 = vpop.permute.xlu0 %1182
      %vm1208 = vcmask 31744
      %v1209 = vsel %vm1208, %v391, %v570
      %v1210 = vsel %vm1208, %v392, %v572
      %v1211 = vsel %vm1208, %v393, %v574
      %v1212 = vsel %vm1208, %v394, %v576
      %v1213 = vsel %vm1208, %v395, %v578
      %v1214 = vsel %vm1208, %v396, %v580
      %v1215 = vsel %vm1208, %v397, %v582
      %v1216 = vsel %vm1208, %v398, %v584
      %v1217 = vsel %vm1208, %v399, %v586
      %v1218 = vsel %vm1208, %v400, %v588
      %v1219 = vsel %vm1208, %v401, %v590
      %v1220 = vsel %vm1208, %v402, %v592
      %v1221 = vsel %vm1208, %v403, %v594
      %v1222 = vsel %vm1208, %v404, %v596
      %v1223 = vsel %vm1208, %v405, %v598
      %v1224 = vsel %vm1208, %v406, %v600
      %v1225 = vsel %vm1208, %v407, %v602
      %v1226 = vsel %vm1208, %v408, %v604
      %v1227 = vsel %vm1208, %v409, %v606
      %v1228 = vsel %vm1208, %v410, %v608
      %v1229 = vsel %vm1208, %v411, %v610
      %v1230 = vsel %vm1208, %v412, %v612
      %v1231 = vsel %vm1208, %v413, %v614
      %v1232 = vsel %vm1208, %v414, %v616
      %vm1233 = vcmask 64512
      %v1234 = vsel %vm1233, %v1209, %v666
      %v1235 = vsel %vm1233, %v1210, %v668
      %v1236 = vsel %vm1233, %v1211, %v670
      %v1237 = vsel %vm1233, %v1212, %v672
      %v1238 = vsel %vm1233, %v1213, %v674
      %v1239 = vsel %vm1233, %v1214, %v676
      %v1240 = vsel %vm1233, %v1215, %v678
      %v1241 = vsel %vm1233, %v1216, %v680
      %v1242 = vsel %vm1233, %v1217, %v682
      %v1243 = vsel %vm1233, %v1218, %v684
      %v1244 = vsel %vm1233, %v1219, %v686
      %v1245 = vsel %vm1233, %v1220, %v688
      %v1246 = vsel %vm1233, %v1221, %v690
      %v1247 = vsel %vm1233, %v1222, %v692
      %v1248 = vsel %vm1233, %v1223, %v694
      %v1249 = vsel %vm1233, %v1224, %v696
      %v1250 = vsel %vm1233, %v1225, %v698
      %v1251 = vsel %vm1233, %v1226, %v700
      %v1252 = vsel %vm1233, %v1227, %v702
      %v1253 = vsel %vm1233, %v1228, %v704
      %v1254 = vsel %vm1233, %v1229, %v706
      %v1255 = vsel %vm1233, %v1230, %v708
      %v1256 = vsel %vm1233, %v1231, %v710
      %v1257 = vsel %vm1233, %v1232, %v712
      %vm1258 = vcmask 97280
      %v1259 = vsel %vm1258, %v1234, %v762
      %v1260 = vsel %vm1258, %v1235, %v764
      %v1261 = vsel %vm1258, %v1236, %v766
      %v1262 = vsel %vm1258, %v1237, %v768
      %v1263 = vsel %vm1258, %v1238, %v770
      %v1264 = vsel %vm1258, %v1239, %v772
      %v1265 = vsel %vm1258, %v1240, %v774
      %v1266 = vsel %vm1258, %v1241, %v776
      %v1267 = vsel %vm1258, %v1242, %v778
      %v1268 = vsel %vm1258, %v1243, %v780
      %v1269 = vsel %vm1258, %v1244, %v782
      %v1270 = vsel %vm1258, %v1245, %v784
      %v1271 = vsel %vm1258, %v1246, %v786
      %v1272 = vsel %vm1258, %v1247, %v788
      %v1273 = vsel %vm1258, %v1248, %v790
      %v1274 = vsel %vm1258, %v1249, %v792
      %v1275 = vsel %vm1258, %v1250, %v794
      %v1276 = vsel %vm1258, %v1251, %v796
      %v1277 = vsel %vm1258, %v1252, %v798
      %v1278 = vsel %vm1258, %v1253, %v800
      %v1279 = vsel %vm1258, %v1254, %v802
      %v1280 = vsel %vm1258, %v1255, %v804
      %v1281 = vsel %vm1258, %v1256, %v806
      %v1282 = vsel %vm1258, %v1257, %v808
      %vm1283 = vcmask 130048
      %v1284 = vsel %vm1283, %v1259, %v837
      %v1285 = vsel %vm1283, %v1260, %v839
      %v1286 = vsel %vm1283, %v1261, %v841
      %v1287 = vsel %vm1283, %v1262, %v843
      %v1288 = vsel %vm1283, %v1263, %v845
      %v1289 = vsel %vm1283, %v1264, %v847
      %v1290 = vsel %vm1283, %v1265, %v849
      %v1291 = vsel %vm1283, %v1266, %v851
      %v1292 = vsel %vm1283, %v1267, %v853
      %v1293 = vsel %vm1283, %v1268, %v855
      %v1294 = vsel %vm1283, %v1269, %v857
      %v1295 = vsel %vm1283, %v1270, %v859
      %v1296 = vsel %vm1283, %v1271, %v861
      %v1297 = vsel %vm1283, %v1272, %v863
      %v1298 = vsel %vm1283, %v1273, %v865
      %v1299 = vsel %vm1283, %v1274, %v867
      %v1300 = vsel %vm1283, %v1275, %v869
      %v1301 = vsel %vm1283, %v1276, %v871
      %v1302 = vsel %vm1283, %v1277, %v873
      %v1303 = vsel %vm1283, %v1278, %v875
      %v1304 = vsel %vm1283, %v1279, %v877
      %v1305 = vsel %vm1283, %v1280, %v879
      %v1306 = vsel %vm1283, %v1281, %v881
      %v1307 = vsel %vm1283, %v1282, %v883
      %vm1308 = vcmask 162816
      %v1309 = vsel %vm1308, %v1284, %v912
      %v1310 = vsel %vm1308, %v1285, %v914
      %v1311 = vsel %vm1308, %v1286, %v916
      %v1312 = vsel %vm1308, %v1287, %v918
      %v1313 = vsel %vm1308, %v1288, %v920
      %v1314 = vsel %vm1308, %v1289, %v922
      %v1315 = vsel %vm1308, %v1290, %v924
      %v1316 = vsel %vm1308, %v1291, %v926
      %v1317 = vsel %vm1308, %v1292, %v928
      %v1318 = vsel %vm1308, %v1293, %v930
      %v1319 = vsel %vm1308, %v1294, %v932
      %v1320 = vsel %vm1308, %v1295, %v934
      %v1321 = vsel %vm1308, %v1296, %v936
      %v1322 = vsel %vm1308, %v1297, %v938
      %v1323 = vsel %vm1308, %v1298, %v940
      %v1324 = vsel %vm1308, %v1299, %v942
      %v1325 = vsel %vm1308, %v1300, %v944
      %v1326 = vsel %vm1308, %v1301, %v946
      %v1327 = vsel %vm1308, %v1302, %v948
      %v1328 = vsel %vm1308, %v1303, %v950
      %v1329 = vsel %vm1308, %v1304, %v952
      %v1330 = vsel %vm1308, %v1305, %v954
      %v1331 = vsel %vm1308, %v1306, %v956
      %v1332 = vsel %vm1308, %v1307, %v958
      %vm1333 = vcmask 195584
      %v1334 = vsel %vm1333, %v1309, %v987
      %v1335 = vsel %vm1333, %v1310, %v989
      %v1336 = vsel %vm1333, %v1311, %v991
      %v1337 = vsel %vm1333, %v1312, %v993
      %v1338 = vsel %vm1333, %v1313, %v995
      %v1339 = vsel %vm1333, %v1314, %v997
      %v1340 = vsel %vm1333, %v1315, %v999
      %v1341 = vsel %vm1333, %v1316, %v1001
      %v1342 = vsel %vm1333, %v1317, %v1003
      %v1343 = vsel %vm1333, %v1318, %v1005
      %v1344 = vsel %vm1333, %v1319, %v1007
      %v1345 = vsel %vm1333, %v1320, %v1009
      %v1346 = vsel %vm1333, %v1321, %v1011
      %v1347 = vsel %vm1333, %v1322, %v1013
      %v1348 = vsel %vm1333, %v1323, %v1015
      %v1349 = vsel %vm1333, %v1324, %v1017
      %v1350 = vsel %vm1333, %v1325, %v1019
      %v1351 = vsel %vm1333, %v1326, %v1021
      %v1352 = vsel %vm1333, %v1327, %v1023
      %v1353 = vsel %vm1333, %v1328, %v1025
      %v1354 = vsel %vm1333, %v1329, %v1027
      %v1355 = vsel %vm1333, %v1330, %v1029
      %v1356 = vsel %vm1333, %v1331, %v1031
      %v1357 = vsel %vm1333, %v1332, %v1033
      %vm1358 = vcmask 228352
      %v1359 = vsel %vm1358, %v1334, %v1062
      %v1360 = vsel %vm1358, %v1335, %v1064
      %v1361 = vsel %vm1358, %v1336, %v1066
      %v1362 = vsel %vm1358, %v1337, %v1068
      %v1363 = vsel %vm1358, %v1338, %v1070
      %v1364 = vsel %vm1358, %v1339, %v1072
      %v1365 = vsel %vm1358, %v1340, %v1074
      %v1366 = vsel %vm1358, %v1341, %v1076
      %v1367 = vsel %vm1358, %v1342, %v1078
      %v1368 = vsel %vm1358, %v1343, %v1080
      %v1369 = vsel %vm1358, %v1344, %v1082
      %v1370 = vsel %vm1358, %v1345, %v1084
      %v1371 = vsel %vm1358, %v1346, %v1086
      %v1372 = vsel %vm1358, %v1347, %v1088
      %v1373 = vsel %vm1358, %v1348, %v1090
      %v1374 = vsel %vm1358, %v1349, %v1092
      %v1375 = vsel %vm1358, %v1350, %v1094
      %v1376 = vsel %vm1358, %v1351, %v1096
      %v1377 = vsel %vm1358, %v1352, %v1098
      %v1378 = vsel %vm1358, %v1353, %v1100
      %v1379 = vsel %vm1358, %v1354, %v1102
      %v1380 = vsel %vm1358, %v1355, %v1104
      %v1381 = vsel %vm1358, %v1356, %v1106
      %v1382 = vsel %vm1358, %v1357, %v1108
      %vm1383 = vcmask 261120
      %v1384 = vsel %vm1383, %v1359, %v1137
      %v1385 = vsel %vm1383, %v1360, %v1139
      %v1386 = vsel %vm1383, %v1361, %v1141
      %v1387 = vsel %vm1383, %v1362, %v1143
      %v1388 = vsel %vm1383, %v1363, %v1145
      %v1389 = vsel %vm1383, %v1364, %v1147
      %v1390 = vsel %vm1383, %v1365, %v1149
      %v1391 = vsel %vm1383, %v1366, %v1151
      %v1392 = vsel %vm1383, %v1367, %v1153
      %v1393 = vsel %vm1383, %v1368, %v1155
      %v1394 = vsel %vm1383, %v1369, %v1157
      %v1395 = vsel %vm1383, %v1370, %v1159
      %v1396 = vsel %vm1383, %v1371, %v1161
      %v1397 = vsel %vm1383, %v1372, %v1163
      %v1398 = vsel %vm1383, %v1373, %v1165
      %v1399 = vsel %vm1383, %v1374, %v1167
      %v1400 = vsel %vm1383, %v1375, %v1169
      %v1401 = vsel %vm1383, %v1376, %v1171
      %v1402 = vsel %vm1383, %v1377, %v1173
      %v1403 = vsel %vm1383, %v1378, %v1175
      %v1404 = vsel %vm1383, %v1379, %v1177
      %v1405 = vsel %vm1383, %v1380, %v1179
      %v1406 = vsel %vm1383, %v1381, %v1181
      %v1407 = vsel %vm1383, %v1382, %v1183
      %v1408 = vld [vmem:[%s3] sm:$0xff]
      %v1409 = vld [vmem:[%s3 + $0x8] sm:$0xff]
      %v1410 = vld [vmem:[%s3 + $0x10] sm:$0xff]
      %v1411 = vld [vmem:[%s3 + $0x18] sm:$0xff]
      %v1412 = vld [vmem:[%s3 + $0x20] sm:$0xf]
      %v1413 = vld [vmem:[%s4] sm:$0x1]
      %v1415 = vlaneseq
      %v1416 = vshrl.u32 %v1415, 7
      %v1417 = vsub.s32 0, %v1416
      %v1418 = vrot.slane %v1413, %v1417
      %vm1420 = vcmask 293888
      %v1422 = vsel %vm1420, %v1384, 0
      %v1425 = vsel %vm1420, %v1385, 0
      %v1428 = vsel %vm1420, %v1386, 0
      %v1431 = vsel %vm1420, %v1387, 0
      %v1434 = vsel %vm1420, %v1388, 0
      %v1437 = vsel %vm1420, %v1389, 0
      %v1440 = vsel %vm1420, %v1390, 0
      %v1443 = vsel %vm1420, %v1391, 0
      %v1446 = vsel %vm1420, %v1392, 0
      %v1449 = vsel %vm1420, %v1393, 0
      %v1452 = vsel %vm1420, %v1394, 0
      %v1455 = vsel %vm1420, %v1395, 0
      %v1458 = vsel %vm1420, %v1396, 0
      %v1461 = vsel %vm1420, %v1397, 0
      %v1464 = vsel %vm1420, %v1398, 0
      %v1467 = vsel %vm1420, %v1399, 0
      %v1470 = vsel %vm1420, %v1400, 0
      %v1473 = vsel %vm1420, %v1401, 0
      %v1476 = vsel %vm1420, %v1402, 0
      %v1479 = vsel %vm1420, %v1403, 0
      %v1482 = vsel %vm1420, %v1404, 0
      %v1485 = vsel %vm1420, %v1405, 0
      %v1488 = vsel %vm1420, %v1406, 0
      %v1491 = vsel %vm1420, %v1407, 0
      %vm1493 = vcmask 1043456
      %v1495 = vsel %vm1493, %v1412, 0
      %1497 = vmatprep.subr.mxu0 0.0
      %1498 = vmatpush1.msra.mxu0 0.0
      %1499 = vmatprep.subr.mxu0 0.0
      %1500 = vmatpush1.msra.mxu0 0.0
      %1501 = vmatprep.subr.mxu0 0.0
      %1502 = vmatpush1.msra.mxu0 0.0
      %1503 = vmatprep.subr.mxu0 0.0
      %1504 = vmatpush1.msra.mxu0 0.0
      %1505 = vmatprep.subr.mxu0 0.0
      %1506 = vmatpush1.msra.mxu0 0.0
      %1507 = vmatprep.subr.mxu0 0.0
      %1508 = vmatpush1.msra.mxu0 0.0
      %1509 = vmatprep.subr.mxu0 0.0
      %1510 = vmatpush1.msra.mxu0 0.0
      %1511 = vmatprep.subr.mxu0 0.0
      %1512 = vmatpush1.msra.mxu0 0.0
      %1513 = vmatprep.subr.mxu0 0.0
      %1514 = vmatpush1.msra.mxu0 0.0
      %1515 = vmatprep.subr.mxu0 0.0
      %1516 = vmatpush1.msra.mxu0 0.0
      %1517 = vmatprep.subr.mxu0 0.0
      %1518 = vmatpush1.msra.mxu0 0.0
      %1519 = vmatprep.subr.mxu0 0.0
      %1520 = vmatpush1.msra.mxu0 %v1495
      %1521 = vmatprep.subr.mxu0 0.0
      %1522 = vmatpush1.msra.mxu0 %v1411
      %1523 = vmatprep.subr.mxu0 0.0
      %1524 = vmatpush1.msra.mxu0 %v1410
      %1525 = vmatprep.subr.mxu0 0.0
      %1526 = vmatpush1.msra.mxu0 %v1409
      %1527 = vmatprep.subr.mxu0 0.0
      %1528 = vmatpush1.msra.mxu0 %v1408
      %1529 = vmatprep.subr.mxu0 0.0
      %1530 = vmatpush2.msra.mxu0 0.0
      %1531 = vmatprep.subr.mxu0 0.0
      %1532 = vmatpush2.msra.mxu0 0.0
      %1533 = vmatprep.subr.mxu0 0.0
      %1534 = vmatpush2.msra.mxu0 0.0
      %1535 = vmatprep.subr.mxu0 0.0
      %1536 = vmatpush2.msra.mxu0 0.0
      %1537 = vmatprep.subr.mxu0 0.0
      %1538 = vmatpush2.msra.mxu0 0.0
      %1539 = vmatprep.subr.mxu0 0.0
      %1540 = vmatpush2.msra.mxu0 0.0
      %1541 = vmatprep.subr.mxu0 0.0
      %1542 = vmatpush2.msra.mxu0 0.0
      %1543 = vmatprep.subr.mxu0 0.0
      %1544 = vmatpush2.msra.mxu0 0.0
      %1545 = vmatprep.subr.mxu0 0.0
      %1546 = vmatpush2.msra.mxu0 0.0
      %1547 = vmatprep.subr.mxu0 0.0
      %1548 = vmatpush2.msra.mxu0 0.0
      %1549 = vmatprep.subr.mxu0 0.0
      %1550 = vmatpush2.msra.mxu0 0.0
      %1551 = vmatprep.subr.mxu0 0.0
      %1552 = vmatpush2.msra.mxu0 0.0
      %1553 = vmatprep.subr.mxu0 0.0
      %1554 = vmatpush2.msra.mxu0 0.0
      %1555 = vmatprep.subr.mxu0 0.0
      %1556 = vmatpush2.msra.mxu0 0.0
      %1557 = vmatprep.subr.mxu0 0.0
      %1558 = vmatpush2.msra.mxu0 0.0
      %1559 = vmatprep.subr.mxu0 0.0
      %1560 = vmatpush2.msra.mxu0 0.0
      %1561 = vmatprep.mubr.f32.mxu0 0.0
      %1562 = vmatmul.mubr.f32.gmra.mxu0 %v1422
      %v1563 = vpop.f32.mrf.mxu0
      %v1564 = vadd.f32 %v1418, %v1563
      %v1565 = vpop.f32.mrf.mxu0
      %1566 = vmatprep.mubr.f32.mxu0 0.0
      %1567 = vmatmul.mubr.f32.gmra.mxu0 %v1425
      %v1568 = vpop.f32.mrf.mxu0
      %v1569 = vadd.f32 %v1418, %v1568
      %v1570 = vpop.f32.mrf.mxu0
      %1571 = vmatprep.mubr.f32.mxu0 0.0
      %1572 = vmatmul.mubr.f32.gmra.mxu0 %v1428
      %v1573 = vpop.f32.mrf.mxu0
      %v1574 = vadd.f32 %v1418, %v1573
      %v1575 = vpop.f32.mrf.mxu0
      %1576 = vmatprep.mubr.f32.mxu0 0.0
      %1577 = vmatmul.mubr.f32.gmra.mxu0 %v1431
      %v1578 = vpop.f32.mrf.mxu0
      %v1579 = vadd.f32 %v1418, %v1578
      %v1580 = vpop.f32.mrf.mxu0
      %1581 = vmatprep.mubr.f32.mxu0 0.0
      %1582 = vmatmul.mubr.f32.gmra.mxu0 %v1434
      %v1583 = vpop.f32.mrf.mxu0
      %v1584 = vadd.f32 %v1418, %v1583
      %v1585 = vpop.f32.mrf.mxu0
      %1586 = vmatprep.mubr.f32.mxu0 0.0
      %1587 = vmatmul.mubr.f32.gmra.mxu0 %v1437
      %v1588 = vpop.f32.mrf.mxu0
      %v1589 = vadd.f32 %v1418, %v1588
      %v1590 = vpop.f32.mrf.mxu0
      %1591 = vmatprep.mubr.f32.mxu0 0.0
      %1592 = vmatmul.mubr.f32.gmra.mxu0 %v1440
      %v1593 = vpop.f32.mrf.mxu0
      %v1594 = vadd.f32 %v1418, %v1593
      %v1595 = vpop.f32.mrf.mxu0
      %1596 = vmatprep.mubr.f32.mxu0 0.0
      %1597 = vmatmul.mubr.f32.gmra.mxu0 %v1443
      %v1598 = vpop.f32.mrf.mxu0
      %v1599 = vadd.f32 %v1418, %v1598
      %v1600 = vpop.f32.mrf.mxu0
      %1601 = vmatprep.mubr.f32.mxu0 0.0
      %1602 = vmatmul.mubr.f32.gmra.mxu0 %v1446
      %v1603 = vpop.f32.mrf.mxu0
      %v1604 = vadd.f32 %v1418, %v1603
      %v1605 = vpop.f32.mrf.mxu0
      %1606 = vmatprep.mubr.f32.mxu0 0.0
      %1607 = vmatmul.mubr.f32.gmra.mxu0 %v1449
      %v1608 = vpop.f32.mrf.mxu0
      %v1609 = vadd.f32 %v1418, %v1608
      %v1610 = vpop.f32.mrf.mxu0
      %1611 = vmatprep.mubr.f32.mxu0 0.0
      %1612 = vmatmul.mubr.f32.gmra.mxu0 %v1452
      %v1613 = vpop.f32.mrf.mxu0
      %v1614 = vadd.f32 %v1418, %v1613
      %v1615 = vpop.f32.mrf.mxu0
      %1616 = vmatprep.mubr.f32.mxu0 0.0
      %1617 = vmatmul.mubr.f32.gmra.mxu0 %v1455
      %v1618 = vpop.f32.mrf.mxu0
      %v1619 = vadd.f32 %v1418, %v1618
      %v1620 = vpop.f32.mrf.mxu0
      %1621 = vmatprep.mubr.f32.mxu0 0.0
      %1622 = vmatmul.mubr.f32.gmra.mxu0 %v1458
      %v1623 = vpop.f32.mrf.mxu0
      %v1624 = vadd.f32 %v1418, %v1623
      %v1625 = vpop.f32.mrf.mxu0
      %1626 = vmatprep.mubr.f32.mxu0 0.0
      %1627 = vmatmul.mubr.f32.gmra.mxu0 %v1461
      %v1628 = vpop.f32.mrf.mxu0
      %v1629 = vadd.f32 %v1418, %v1628
      %v1630 = vpop.f32.mrf.mxu0
      %1631 = vmatprep.mubr.f32.mxu0 0.0
      %1632 = vmatmul.mubr.f32.gmra.mxu0 %v1464
      %v1633 = vpop.f32.mrf.mxu0
      %v1634 = vadd.f32 %v1418, %v1633
      %v1635 = vpop.f32.mrf.mxu0
      %1636 = vmatprep.mubr.f32.mxu0 0.0
      %1637 = vmatmul.mubr.f32.gmra.mxu0 %v1467
      %v1638 = vpop.f32.mrf.mxu0
      %v1639 = vadd.f32 %v1418, %v1638
      %v1640 = vpop.f32.mrf.mxu0
      %1641 = vmatprep.mubr.f32.mxu0 0.0
      %1642 = vmatmul.mubr.f32.gmra.mxu0 %v1470
      %v1643 = vpop.f32.mrf.mxu0
      %v1644 = vadd.f32 %v1418, %v1643
      %v1645 = vpop.f32.mrf.mxu0
      %1646 = vmatprep.mubr.f32.mxu0 0.0
      %1647 = vmatmul.mubr.f32.gmra.mxu0 %v1473
      %v1648 = vpop.f32.mrf.mxu0
      %v1649 = vadd.f32 %v1418, %v1648
      %v1650 = vpop.f32.mrf.mxu0
      %1651 = vmatprep.mubr.f32.mxu0 0.0
      %1652 = vmatmul.mubr.f32.gmra.mxu0 %v1476
      %v1653 = vpop.f32.mrf.mxu0
      %v1654 = vadd.f32 %v1418, %v1653
      %v1655 = vpop.f32.mrf.mxu0
      %1656 = vmatprep.mubr.f32.mxu0 0.0
      %1657 = vmatmul.mubr.f32.gmra.mxu0 %v1479
      %v1658 = vpop.f32.mrf.mxu0
      %v1659 = vadd.f32 %v1418, %v1658
      %v1660 = vpop.f32.mrf.mxu0
      %1661 = vmatprep.mubr.f32.mxu0 0.0
      %1662 = vmatmul.mubr.f32.gmra.mxu0 %v1482
      %v1663 = vpop.f32.mrf.mxu0
      %v1664 = vadd.f32 %v1418, %v1663
      %v1665 = vpop.f32.mrf.mxu0
      %1666 = vmatprep.mubr.f32.mxu0 0.0
      %1667 = vmatmul.mubr.f32.gmra.mxu0 %v1485
      %v1668 = vpop.f32.mrf.mxu0
      %v1669 = vadd.f32 %v1418, %v1668
      %v1670 = vpop.f32.mrf.mxu0
      %1671 = vmatprep.mubr.f32.mxu0 0.0
      %1672 = vmatmul.mubr.f32.gmra.mxu0 %v1488
      %v1673 = vpop.f32.mrf.mxu0
      %v1674 = vadd.f32 %v1418, %v1673
      %v1675 = vpop.f32.mrf.mxu0
      %1676 = vmatprep.mubr.f32.mxu0 0.0
      %1677 = vmatmul.mubr.f32.gmra.mxu0 %v1491
      %v1678 = vpop.f32.mrf.mxu0
      %v1679 = vadd.f32 %v1418, %v1678
      %v1680 = vpop.f32.mrf.mxu0
      %1681 = vdwg.mxu0
      %1682 = vst [vmem:[%s389] sm:$0xff] %v1564
      %1683 = vst [vmem:[%s389 + $0x8] sm:$0xff] %v1569
      %1684 = vst [vmem:[%s389 + $0x10] sm:$0xff] %v1574
      %1685 = vst [vmem:[%s389 + $0x18] sm:$0xff] %v1579
      %1686 = vst [vmem:[%s389 + $0x20] sm:$0xff] %v1584
      %1687 = vst [vmem:[%s389 + $0x28] sm:$0xff] %v1589
      %1688 = vst [vmem:[%s389 + $0x30] sm:$0xff] %v1594
      %1689 = vst [vmem:[%s389 + $0x38] sm:$0xff] %v1599
      %1690 = vst [vmem:[%s389 + $0x40] sm:$0xff] %v1604
      %1691 = vst [vmem:[%s389 + $0x48] sm:$0xff] %v1609
      %1692 = vst [vmem:[%s389 + $0x50] sm:$0xff] %v1614
      %1693 = vst [vmem:[%s389 + $0x58] sm:$0xff] %v1619
      %1694 = vst [vmem:[%s389 + $0x60] sm:$0xff] %v1624
      %1695 = vst [vmem:[%s389 + $0x68] sm:$0xff] %v1629
      %1696 = vst [vmem:[%s389 + $0x70] sm:$0xff] %v1634
      %1697 = vst [vmem:[%s389 + $0x78] sm:$0xff] %v1639
      %1698 = vst [vmem:[%s389 + $0x80] sm:$0xff] %v1644
      %1699 = vst [vmem:[%s389 + $0x88] sm:$0xff] %v1649
      %1700 = vst [vmem:[%s389 + $0x90] sm:$0xff] %v1654
      %1701 = vst [vmem:[%s389 + $0x98] sm:$0xff] %v1659
      %1702 = vst [vmem:[%s389 + $0xa0] sm:$0xff] %v1664
      %1703 = vst [vmem:[%s389 + $0xa8] sm:$0xff] %v1669
      %1704 = vst [vmem:[%s389 + $0xb0] sm:$0xff] %v1674
      %1705 = vst [vmem:[%s389 + $0xb8] sm:$0xff] %v1679
      %s1706 = smul.u32 24, %s21
      %p1707 = scmp.lt.s32.totalorder %s20, 1
      %s1708 = scalar_select %p1707, %s20, 1
      %p1709 = scmp.lt.s32.totalorder %s1706, 47
      %s1710 = scalar_select %p1709, %s1706, 47
      %s1711 = smul.addr %s1708, 48
      %s1712 = sadd.s32 %s1710, %s1711
      %s1713 = smul.addr %s1712, 8
      %s1714 = scalar_lea.vmem %s5, %s1713
      // Predicated region
      $region41: #{_lambda_.1} parent=39 // pred_check
        %p1715 = pneg %p184
      $region42: #{_lambda_.1} parent=39 // pred_check_branch
        %1717 = sbr.rel (%p1715) target = $region44
      $region43: #{_lambda_.1} parent=39 // pred_region
        %s1718 = smul.u32 24, %s21
      $region44: #{_lambda_.1} parent=39 // pred_fallthru
        _
    $region40: #{_lambda_.1} parent=5 // pred_fallthru
      _
    %p1719 = scmp.le.s32.totalorder 2, %s11
    // Predicated region
    $region45: #{_lambda_.1} parent=5 // pred_check
      %p1720 = pneg %p1719
    $region46: #{_lambda_.1} parent=5 // pred_check_branch
      %1722 = sbr.rel (%p1720) target = $region48
    $region47: #{_lambda_.1} parent=5 // pred_region
      %s1723 = ssub.s32 %s11, 2
      // Predicated region
      $region49: #{_lambda_.1} parent=47 // pred_check
        %p1724 = pneg %p190
      $region50: #{_lambda_.1} parent=47 // pred_check_branch
        %1726 = sbr.rel (%p1724) target = $region52
      $region51: #{_lambda_.1} parent=47 // pred_region
        %s1727 = smul.u32 24, %s23
        %p1728 = scmp.lt.s32.totalorder %s22, 1
        %s1729 = scalar_select %p1728, %s22, 1
        %p1730 = scmp.lt.s32.totalorder %s1727, 47
        %s1731 = scalar_select %p1730, %s1727, 47
        %s1732 = smul.addr %s1729, 48
        %s1733 = sadd.s32 %s1731, %s1732
        %s1734 = smul.addr %s1733, 8
        %s1735 = scalar_lea.vmem %s5, %s1734
      $region52: #{_lambda_.1} parent=47 // pred_fallthru
        _
    $region48: #{_lambda_.1} parent=5 // pred_fallthru
      _
  $region6: #{_lambda_.1} parent=0 // loop_footer
    %s15 = sadd.s32 1, %s11
  $region7: #{_lambda_.1} parent=0 // loop_footer_branch
    %10 = sbr.rel target = $region3
  $region8: #{_lambda_.1} parent=0 // loop_exit
    _

</llo_original>
